<compile_context>
chip_gen: v7x
topology: tpu7x:2x2x1
jax: 0.10.0
libtpu: 0.0.40
codegen_flags: <defaults>
</compile_context>

<pallas_src>
import functools

import jax
import jax.numpy as jnp
from jax.experimental import pallas as pl
from jax.experimental.pallas import tpu as pltpu


def _logreg_kernel(x_ref, w_ref, b_ref, o_ref, *, n_features, pack):
    # x_ref: (TB, pack*F) f32 VMEM  -- `pack` consecutive batch rows per 128-lane row
    # w_ref: (1,  pack*F) f32 VMEM  -- weight row tiled `pack` times (resident)
    # b_ref: (1, 1)       f32 SMEM  -- scalar bias
    # o_ref: (TB, pack)   f32 VMEM
    prod = x_ref[...] * w_ref[...]          # VPU elementwise, full 128-lane vregs
    b = b_ref[0, 0]
    for g in range(pack):                   # static, fully unrolled (pack <= 128)
        seg = prod[:, g * n_features:(g + 1) * n_features]
        logit = jnp.sum(seg, axis=-1, keepdims=True) + b      # XLU lane reduce
        o_ref[:, g:g + 1] = jax.nn.sigmoid(logit).astype(o_ref.dtype)


def logistic_regression(x, weight, bias, *, block_rows=1024):
    """x: (B, F) f32, weight: (1, F) f32, bias: (1,) f32 -> (B, 1) f32."""
    B, F = x.shape

    # Pack several batch rows onto the 128-lane axis when the feature dim is small.
    pack = 128 // F if (F < 128 and 128 % F == 0) else 1
    pf = pack * F

    rows = -(-B // pack)                        # packed rows needed
    tb = min(block_rows, -(-rows // 8) * 8)     # rows per tile (multiple of 8)
    rows_p = -(-rows // tb) * tb                # padded to a whole number of tiles
    bp = rows_p * pack

    if bp != B:
        # Zero rows produce sigmoid(bias) and are sliced off below.
        x = jnp.pad(x, ((0, bp - B), (0, 0)))
    x_packed = x.reshape(rows_p, pf)            # free reshape (row-major contiguous)

    w_packed = jnp.tile(weight.reshape(1, F), (1, pack))    # (1, pack*F)
    b2 = bias.reshape(1, 1)

    kernel = functools.partial(_logreg_kernel, n_features=F, pack=pack)

    out = pl.pallas_call(
        kernel,
        out_shape=jax.ShapeDtypeStruct((rows_p, pack), x.dtype),
        grid=(rows_p // tb,),
        in_specs=[
            pl.BlockSpec((tb, pf), lambda i: (i, 0)),    # x tile, double-buffered
            pl.BlockSpec((1, pf), lambda i: (0, 0)),     # weight, resident across grid
            pl.BlockSpec(memory_space=pltpu.SMEM),       # scalar bias
        ],
        out_specs=pl.BlockSpec((tb, pack), lambda i: (i, 0)),
        compiler_params=pltpu.CompilerParams(
            dimension_semantics=("parallel",)),          # shard tiles across TCs (v7x)
        cost_estimate=pl.CostEstimate(
            flops=2 * B * F,
            transcendentals=B,
            bytes_accessed=4 * B * F + 4 * B + 4 * F + 4),
    )(x_packed, w_packed, b2)

    return out.reshape(bp)[:B].reshape(B, 1)


if __name__ == "__main__":
    key = jax.random.PRNGKey(0)
    k_x, k_w, k_b = jax.random.split(key, 3)

    batch = 8
    n_features = 32

    x = jax.random.normal(k_x, (batch, n_features), dtype=jnp.float32)
    # Deterministic init mimicking nn.Linear's uniform(-1/sqrt(F), 1/sqrt(F)) range.
    bound = 1.0 / jnp.sqrt(jnp.float32(n_features))
    weight = jax.random.uniform(k_w, (1, n_features), dtype=jnp.float32,
                                minval=-bound, maxval=bound)
    bias = jax.random.uniform(k_b, (1,), dtype=jnp.float32,
                              minval=-bound, maxval=bound)

    y = logistic_regression(x, weight, bias)
    jax.block_until_ready(y)

    y_ref = jax.nn.sigmoid(
        jnp.matmul(x, weight.T, precision=jax.lax.Precision.HIGHEST) + bias)
    assert y.shape == (batch, 1)
    assert jnp.allclose(y, y_ref, atol=1e-5, rtol=1e-5)

    # Exercise the multi-tile (grid > 1) + padding path with a larger, ragged batch.
    x2 = jax.random.normal(jax.random.PRNGKey(1), (5000, n_features),
                           dtype=jnp.float32)
    y2 = logistic_regression(x2, weight, bias)
    jax.block_until_ready(y2)
    y2_ref = jax.nn.sigmoid(
        jnp.matmul(x2, weight.T, precision=jax.lax.Precision.HIGHEST) + bias)
    assert y2.shape == (5000, 1)
    assert jnp.allclose(y2, y2_ref, atol=1e-5, rtol=1e-5)

    print("KERNEL_OK")
</pallas_src>

<mosaic_0001>
module attributes {stable_mosaic.version = 11 : i64} {
  func.func @_logreg_kernel(%arg0: i32, %arg1: memref<8x128xf32, #tpu.memory_space<vmem>>, %arg2: memref<1x128xf32, #tpu.memory_space<vmem>>, %arg3: memref<1x1xf32, #tpu.memory_space<smem>>, %arg4: memref<8x4xf32, #tpu.memory_space<vmem>>) attributes {dimension_semantics = [#tpu.dimension_semantics<parallel>], iteration_bounds = array<i64: 1>, scalar_prefetch = 0 : i64, scratch_operands = 0 : i64, tpu.core_type = #tpu.core_type<tc>, window_params = [{transform_indices = @transform_0, window_bounds = array<i64: 8, 128>}, {pipeline_mode = #tpu.pipeline_mode<synchronous>, transform_indices = @transform_1, window_bounds = array<i64: 1, 128>}, {transform_indices = @transform_2, window_bounds = array<i64: 1, 1>}, {transform_indices = @transform_3, window_bounds = array<i64: 8, 4>}]} {
    %c0 = arith.constant 0 : index
    %c0_0 = arith.constant 0 : index
    %0 = vector.load %arg1[%c0, %c0_0] : memref<8x128xf32, #tpu.memory_space<vmem>>, vector<8x128xf32>
    %c0_1 = arith.constant 0 : index
    %c0_2 = arith.constant 0 : index
    %1 = vector.load %arg2[%c0_1, %c0_2] : memref<1x128xf32, #tpu.memory_space<vmem>>, vector<1x128xf32>
    %2 = vector.broadcast %1 : vector<1x128xf32> to vector<8x128xf32>
    %3 = arith.mulf %0, %2 : vector<8x128xf32>
    %c0_3 = arith.constant 0 : index
    %c0_4 = arith.constant 0 : index
    %4 = memref.load %arg3[%c0_3, %c0_4] : memref<1x1xf32, #tpu.memory_space<smem>>
    %5 = vector.extract_strided_slice %3 {offsets = [0, 0], sizes = [8, 32], strides = [1, 1]} : vector<8x128xf32> to vector<8x32xf32>
    %cst = arith.constant dense<0.000000e+00> : vector<8xf32>
    %6 = vector.multi_reduction <add>, %5, %cst [1] : vector<8x32xf32> to vector<8xf32>
    %7 = vector.shape_cast %6 : vector<8xf32> to vector<8x1xf32>
    %8 = vector.broadcast %4 : f32 to vector<8x1xf32>
    %9 = arith.addf %7, %8 : vector<8x1xf32>
    %10 = arith.negf %9 : vector<8x1xf32>
    %11 = math.exp %10 : vector<8x1xf32>
    %cst_5 = arith.constant 1.000000e+00 : f32
    %12 = vector.broadcast %cst_5 : f32 to vector<8x1xf32>
    %13 = arith.addf %12, %11 : vector<8x1xf32>
    %14 = arith.divf %12, %13 : vector<8x1xf32>
    %c0_6 = arith.constant 0 : index
    %c0_7 = arith.constant 0 : index
    %15 = vector.load %arg4[%c0_6, %c0_7] : memref<8x4xf32, #tpu.memory_space<vmem>>, vector<8x1xf32>
    tpu.vector_store %arg4[%c0_6, %c0_7], %14 {strides = array<i32>} : memref<8x4xf32, #tpu.memory_space<vmem>>, vector<8x1xf32>,
    %16 = vector.extract_strided_slice %3 {offsets = [0, 32], sizes = [8, 32], strides = [1, 1]} : vector<8x128xf32> to vector<8x32xf32>
    %cst_8 = arith.constant dense<0.000000e+00> : vector<8xf32>
    %17 = vector.multi_reduction <add>, %16, %cst_8 [1] : vector<8x32xf32> to vector<8xf32>
    %18 = vector.shape_cast %17 : vector<8xf32> to vector<8x1xf32>
    %19 = vector.broadcast %4 : f32 to vector<8x1xf32>
    %20 = arith.addf %18, %19 : vector<8x1xf32>
    %21 = arith.negf %20 : vector<8x1xf32>
    %22 = math.exp %21 : vector<8x1xf32>
    %cst_9 = arith.constant 1.000000e+00 : f32
    %23 = vector.broadcast %cst_9 : f32 to vector<8x1xf32>
    %24 = arith.addf %23, %22 : vector<8x1xf32>
    %25 = arith.divf %23, %24 : vector<8x1xf32>
    %c0_10 = arith.constant 0 : index
    %c1 = arith.constant 1 : index
    %26 = vector.load %arg4[%c0_10, %c1] : memref<8x4xf32, #tpu.memory_space<vmem>>, vector<8x1xf32>
    tpu.vector_store %arg4[%c0_10, %c1], %25 {strides = array<i32>} : memref<8x4xf32, #tpu.memory_space<vmem>>, vector<8x1xf32>,
    %27 = vector.extract_strided_slice %3 {offsets = [0, 64], sizes = [8, 32], strides = [1, 1]} : vector<8x128xf32> to vector<8x32xf32>
    %cst_11 = arith.constant dense<0.000000e+00> : vector<8xf32>
    %28 = vector.multi_reduction <add>, %27, %cst_11 [1] : vector<8x32xf32> to vector<8xf32>
    %29 = vector.shape_cast %28 : vector<8xf32> to vector<8x1xf32>
    %30 = vector.broadcast %4 : f32 to vector<8x1xf32>
    %31 = arith.addf %29, %30 : vector<8x1xf32>
    %32 = arith.negf %31 : vector<8x1xf32>
    %33 = math.exp %32 : vector<8x1xf32>
    %cst_12 = arith.constant 1.000000e+00 : f32
    %34 = vector.broadcast %cst_12 : f32 to vector<8x1xf32>
    %35 = arith.addf %34, %33 : vector<8x1xf32>
    %36 = arith.divf %34, %35 : vector<8x1xf32>
    %c0_13 = arith.constant 0 : index
    %c2 = arith.constant 2 : index
    %37 = vector.load %arg4[%c0_13, %c2] : memref<8x4xf32, #tpu.memory_space<vmem>>, vector<8x1xf32>
    tpu.vector_store %arg4[%c0_13, %c2], %36 {strides = array<i32>} : memref<8x4xf32, #tpu.memory_space<vmem>>, vector<8x1xf32>,
    %38 = vector.extract_strided_slice %3 {offsets = [0, 96], sizes = [8, 32], strides = [1, 1]} : vector<8x128xf32> to vector<8x32xf32>
    %cst_14 = arith.constant dense<0.000000e+00> : vector<8xf32>
    %39 = vector.multi_reduction <add>, %38, %cst_14 [1] : vector<8x32xf32> to vector<8xf32>
    %40 = vector.shape_cast %39 : vector<8xf32> to vector<8x1xf32>
    %41 = vector.broadcast %4 : f32 to vector<8x1xf32>
    %42 = arith.addf %40, %41 : vector<8x1xf32>
    %43 = arith.negf %42 : vector<8x1xf32>
    %44 = math.exp %43 : vector<8x1xf32>
    %cst_15 = arith.constant 1.000000e+00 : f32
    %45 = vector.broadcast %cst_15 : f32 to vector<8x1xf32>
    %46 = arith.addf %45, %44 : vector<8x1xf32>
    %47 = arith.divf %45, %46 : vector<8x1xf32>
    %c0_16 = arith.constant 0 : index
    %c3 = arith.constant 3 : index
    %48 = vector.load %arg4[%c0_16, %c3] : memref<8x4xf32, #tpu.memory_space<vmem>>, vector<8x1xf32>
    tpu.vector_store %arg4[%c0_16, %c3], %47 {strides = array<i32>} : memref<8x4xf32, #tpu.memory_space<vmem>>, vector<8x1xf32>,
    return
  }
  func.func @transform_0(%arg0: i32) -> (i32, i32) {
    %c0_i32 = arith.constant 0 : i32
    %c0_i32_0 = arith.constant 0 : i32
    return %arg0, %c0_i32 : i32, i32
  }
  func.func @transform_1(%arg0: i32) -> (i32, i32) {
    %c0_i32 = arith.constant 0 : i32
    %c0_i32_0 = arith.constant 0 : i32
    %c0_i32_1 = arith.constant 0 : i32
    return %c0_i32, %c0_i32_0 : i32, i32
  }
  func.func @transform_2(%arg0: i32) -> (i32, i32) {
    %c0_i32 = arith.constant 0 : i32
    %c0_i32_0 = arith.constant 0 : i32
    %c0_i32_1 = arith.constant 0 : i32
    return %c0_i32, %c0_i32_0 : i32, i32
  }
  func.func @transform_3(%arg0: i32) -> (i32, i32) {
    %c0_i32 = arith.constant 0 : i32
    %c0_i32_0 = arith.constant 0 : i32
    return %arg0, %c0_i32 : i32, i32
  }
}

</mosaic_0001>

<llo_original>
// kernel: tpu_custom_call.1
$region0: #{tpu_custom_call.1}
  #allocation0 [shape = 'u32[]', space=smem, size = 0x4, offset = 0x4, fixed_abs, tag = 'smem constant byte address 0x4 - core index']
  #allocation1 [shape = 'u32[144,128]{1,0:T(1,128)}', space=vmem, size = 0x12000, scoped, tag = 'internal scratch']
  #allocation2 [shape = 'f32[1,1]{1,0:T(1,128)S(6)}', space=smem, size = 0x200, scoped, tag = 'scoped memory for tpu_custom_call.1']
  %s0 = inlined_call_operand.hbm [shape: f32[8,128], index: 0, kind: input, shape index: {}]
  %s1 = inlined_call_operand.vmem [shape: f32[1,128], index: 1, kind: input, shape index: {}]
  %s2 = inlined_call_operand.<no memory space> [shape: f32[1,1], index: 2, kind: input, shape index: {}]
  %s3 = inlined_call_operand.vmem [shape: f32[8,4], index: 3, kind: output, shape index: {}]
  %s4 = sld [smem:[#allocation0]]
  $region26: #{tpu_custom_call.1} parent=0
    _
  %s6 = ssub.s32 1, %s4
  %s7 = scalar_select 0, %s6, %s4
  %8 = sst [smem:[#allocation2]] %s2
  $region1: #{tpu_custom_call.1} parent=0
    #allocation3 [shape = 'u8[4096]{0}', space=vmem, size = 0x1000, scoped, tag = 'input window, operand 0, single buffered']
    #allocation4 [shape = 's32[1]{0}', space=sflag, size = 0x4, scoped, tag = 'scoped memory for tpu_custom_call.1']
    %9 = vsyncpa [#allocation4], 0
    // Predicated region
    $region2: #{tpu_custom_call.1} parent=1 // pred_check
      _
    $region3: #{tpu_custom_call.1} parent=1 // pred_check_branch
      %11 = sbr.rel (0) target = $region5
    $region4: #{tpu_custom_call.1} parent=1 // pred_region
      %s13 = ssub.s32 128, 128
      %14 = vsyncadd [#allocation4], %s13
      %s16 = sshll.u32 [#allocation3], 4
      %s17 = int_to_ptr.vmem [resolvable:$true] %s16
      %19 = dma.hbm_to_vmem [thread:$0]  %s0, 128, %s17, [#allocation4]
    $region5: #{tpu_custom_call.1} parent=1 // pred_fallthru
      _
    // Predicated region
    $region6: #{tpu_custom_call.1} parent=1 // pred_check
      _
    $region7: #{tpu_custom_call.1} parent=1 // pred_check_branch
      %21 = sbr.rel (0) target = $region9
    $region8: #{tpu_custom_call.1} parent=1 // pred_region
      _
    $region9: #{tpu_custom_call.1} parent=1 // pred_fallthru
      _
    // Predicated region
    $region10: #{tpu_custom_call.1} parent=1 // pred_check
      _
    $region11: #{tpu_custom_call.1} parent=1 // pred_check_branch
      %23 = sbr.rel (0) target = $region13
    $region12: #{tpu_custom_call.1} parent=1 // pred_region
      _
    $region13: #{tpu_custom_call.1} parent=1 // pred_fallthru
      _
    // Predicated region
    $region14: #{tpu_custom_call.1} parent=1 // pred_check
      _
    $region15: #{tpu_custom_call.1} parent=1 // pred_check_branch
      %25 = sbr.rel (0) target = $region17
    $region16: #{tpu_custom_call.1} parent=1 // pred_region
      %26 = dma.done [#allocation4], 128
    $region17: #{tpu_custom_call.1} parent=1 // pred_fallthru
      _
    %v27 = vld [vmem:[#allocation3] sm:$0xff]
    %v28 = vld [vmem:[%s1] sm:$0x1]
    %v30 = vlaneseq
    %v31 = vshrl.u32 %v30, 7
    %v32 = vsub.s32 0, %v31
    %v33 = vrot.slane %v28, %v32
    %v35 = vmul.f32 %v27, %v33
    %s36 = sld [smem:[#allocation2]]
    %vm37 = vcmask 261120
    %v38 = vsel %vm37, %v35, 0.0
    %39 = vadd.xlane.f32.xlu0 %v38
    %v40 = vpop.xlane.xlu0 %39
    %v41 = vstv %s36
    %v42 = vadd.f32 %v40, %v41
    %v43 = vxor.u32 %v42, 2147483648
    %v44 = vmul.f32 %v43, 1.442695
    %v45 = vpow.pop %v44
    %v46 = vadd.f32 %v45, 1.0
    %v47 = vrcp.pop %v46
    %v48 = vmul.f32 1.0, %v47
    %vm49 = vcmask 7168
    %50 = vst.msk [vmem:[%s3] sm:$0xff] %vm49, %v48
    %52 = vrot.lane.b32.xlu0 %v35, 96
    %v53 = vpop.permute.xlu0 %52
    %v55 = vsel %vm37, %v53, 0.0
    %56 = vadd.xlane.f32.xlu0 %v55
    %v57 = vpop.xlane.xlu0 %56
    %v58 = vadd.f32 %v57, %v41
    %v59 = vxor.u32 %v58, 2147483648
    %v60 = vmul.f32 %v59, 1.442695
    %v61 = vpow.pop %v60
    %v62 = vadd.f32 %v61, 1.0
    %v63 = vrcp.pop %v62
    %v64 = vmul.f32 1.0, %v63
    %vm65 = vcmask 15368
    %66 = vst.msk [vmem:[%s3] sm:$0xff] %vm65, %v64
    %67 = vrot.lane.b32.xlu0 %v35, 64
    %v68 = vpop.permute.xlu0 %67
    %v70 = vsel %vm37, %v68, 0.0
    %71 = vadd.xlane.f32.xlu0 %v70
    %v72 = vpop.xlane.xlu0 %71
    %v73 = vadd.f32 %v72, %v41
    %v74 = vxor.u32 %v73, 2147483648
    %v75 = vmul.f32 %v74, 1.442695
    %v76 = vpow.pop %v75
    %v77 = vadd.f32 %v76, 1.0
    %v78 = vrcp.pop %v77
    %v79 = vmul.f32 1.0, %v78
    %vm80 = vcmask 23568
    %81 = vst.msk [vmem:[%s3] sm:$0xff] %vm80, %v79
    %82 = vrot.lane.b32.xlu0 %v35, 32
    %v83 = vpop.permute.xlu0 %82
    %v85 = vsel %vm37, %v83, 0.0
    %86 = vadd.xlane.f32.xlu0 %v85
    %v87 = vpop.xlane.xlu0 %86
    %v88 = vadd.f32 %v87, %v41
    %v89 = vxor.u32 %v88, 2147483648
    %v90 = vmul.f32 %v89, 1.442695
    %v91 = vpow.pop %v90
    %v92 = vadd.f32 %v91, 1.0
    %v93 = vrcp.pop %v92
    %v94 = vmul.f32 1.0, %v93
    %vm95 = vcmask 31768
    %96 = vst.msk [vmem:[%s3] sm:$0xff] %vm95, %v94
    // Predicated region
    $region18: #{tpu_custom_call.1} parent=1 // pred_check
      _
    $region19: #{tpu_custom_call.1} parent=1 // pred_check_branch
      %98 = sbr.rel (0) target = $region21
    $region20: #{tpu_custom_call.1} parent=1 // pred_region
      _
    $region21: #{tpu_custom_call.1} parent=1 // pred_fallthru
      _
    // Predicated region
    $region22: #{tpu_custom_call.1} parent=1 // pred_check
      _
    $region23: #{tpu_custom_call.1} parent=1 // pred_check_branch
      %100 = sbr.rel (0) target = $region25
    $region24: #{tpu_custom_call.1} parent=1 // pred_region
      _
    $region25: #{tpu_custom_call.1} parent=1 // pred_fallthru
      _
    %101 = vsyncpa [#allocation4], 1

</llo_original>
